<compile_context>
chip_gen: v6e
topology: v6e:2x2x1
jax: 0.10.0
libtpu: 0.0.40
codegen_flags: <defaults>
</compile_context>

<pallas_src>
import functools

import jax
import jax.numpy as jnp
from jax.experimental import pallas as pl
from jax.experimental.pallas import tpu as pltpu

NUM_IN_FEATURES = 87
HIDDEN1 = 60
HIDDEN2 = 20


def _round_up(x, m):
    return ((x + m - 1) // m) * m


def _mlp_kernel(x_ref, w1_ref, b1_ref, w2_ref, b2_ref, w3t_ref, b3t_ref, o_ref,
                *, has_softmax: bool):
    # Read operands once per tile (MXU inputs are bf16, biases stay f32).
    x = x_ref[...]          # (TB, 87)  bf16
    w1 = w1_ref[...]        # (87, 60)  bf16
    w2 = w2_ref[...]        # (60, 20)  bf16
    w3t = w3t_ref[...]      # (out, 20) bf16
    b1 = b1_ref[...]        # (1, 60)   f32
    b2 = b2_ref[...]        # (1, 20)   f32
    b3t = b3t_ref[...]      # (out, 1)  f32

    # Layer 1 + ReLU: bf16 MXU matmul with f32 accumulation; bias/ReLU in f32 on VPU.
    h1 = jnp.dot(x, w1, preferred_element_type=jnp.float32) + b1
    h1 = jnp.maximum(h1, 0.0)

    # Layer 2 + ReLU.
    h2 = jnp.dot(h1.astype(jnp.bfloat16), w2, preferred_element_type=jnp.float32) + b2
    h2 = jnp.maximum(h2, 0.0)

    # Layer 3, produced directly in transposed (lane-dense) form:
    #   y^T[o, b] = sum_k w3[k, o] * h2[b, k]   (A @ B^T contraction, no transpose op)
    yt = jax.lax.dot_general(
        w3t, h2.astype(jnp.bfloat16),
        dimension_numbers=(((1,), (1,)), ((), ())),
        preferred_element_type=jnp.float32) + b3t          # (out, TB) f32

    if has_softmax:
        # Softmax over out_size (axis 0 in the transposed layout), max-subtracted.
        m = jnp.max(yt, axis=0, keepdims=True)
        e = jnp.exp(yt - m)
        yt = e * pl.reciprocal(jnp.sum(e, axis=0, keepdims=True), approx=True)

    o_ref[...] = yt.astype(o_ref.dtype)


def mlp_forward(x, params, *, has_softmax: bool = False, block_b: int = 512,
                x_buffer_count: int = 2):
    """x: (B, 87) float32. params: dict of w1,b1,w2,b2,w3,b3 (weights stored (in, out))."""
    w1, b1 = params["w1"], params["b1"]
    w2, b2 = params["w2"], params["b2"]
    w3, b3 = params["w3"], params["b3"]
    B = x.shape[0]
    in_features = x.shape[1]
    out_size = w3.shape[1]

    # Batch tile: multiple of 16, capped at block_b.  VMEM @ TB=512: 2 x-buffers of
    # ~87 KiB (bf16) + tiny output tiles + ~13 KiB resident weights — far below the
    # scoped VMEM limits on v5e/v6e/v7x.
    tb = min(block_b, _round_up(max(B, 1), 16))
    b_pad = _round_up(B, tb)
    grid = (b_pad // tb,)

    # bf16 only on the MXU inputs; biases (and all elementwise math) stay f32.
    x_bf = x.astype(jnp.bfloat16)
    if b_pad != B:
        x_bf = jnp.pad(x_bf, ((0, b_pad - B), (0, 0)))
    w1_bf = w1.astype(jnp.bfloat16)
    w2_bf = w2.astype(jnp.bfloat16)
    w3t_bf = w3.T.astype(jnp.bfloat16)            # (out_size, 20)
    b1_f = b1.reshape(1, -1).astype(jnp.float32)
    b2_f = b2.reshape(1, -1).astype(jnp.float32)
    b3t_f = b3.reshape(1, -1).T.astype(jnp.float32)  # (out_size, 1)

    x_spec_kwargs = {}
    if x_buffer_count > 2:
        # Optional deeper pipelining if profiling shows exposed DMA on the x fetch.
        x_spec_kwargs["pipeline_mode"] = pl.Buffered(x_buffer_count)
    x_spec = pl.BlockSpec((tb, in_features), lambda i: (i, 0), **x_spec_kwargs)

    # Constant index_map => weights/biases stay resident in VMEM across grid steps.
    resident = lambda arr: pl.BlockSpec(arr.shape, lambda i: (0, 0))

    kernel = functools.partial(_mlp_kernel, has_softmax=has_softmax)
    out_t = pl.pallas_call(
        kernel,
        out_shape=jax.ShapeDtypeStruct((out_size, b_pad), jnp.float32),
        grid=grid,
        in_specs=[
            x_spec,
            resident(w1_bf), resident(b1_f),
            resident(w2_bf), resident(b2_f),
            resident(w3t_bf), resident(b3t_f),
        ],
        out_specs=pl.BlockSpec((out_size, tb), lambda i: (0, i)),
        compiler_params=pltpu.CompilerParams(
            dimension_semantics=("parallel",)),
    )(x_bf, w1_bf, b1_f, w2_bf, b2_f, w3t_bf, b3t_f)

    # Tiny (out_size, B) slice+transpose back to the PyTorch (B, out_size) layout.
    return out_t[:, :B].T


def init_params(key, out_size=3):
    """torch.nn.Linear-style init (U[-1/sqrt(fan_in), +1/sqrt(fan_in)]).
    Weights stored as (in_features, out_features); biases as (1, out_features)."""
    def linear(key, fan_in, fan_out):
        kw, kb = jax.random.split(key)
        bound = 1.0 / jnp.sqrt(float(fan_in))
        w = jax.random.uniform(kw, (fan_in, fan_out), jnp.float32, -bound, bound)
        b = jax.random.uniform(kb, (1, fan_out), jnp.float32, -bound, bound)
        return w, b

    k1, k2, k3 = jax.random.split(key, 3)
    w1, b1 = linear(k1, NUM_IN_FEATURES, HIDDEN1)
    w2, b2 = linear(k2, HIDDEN1, HIDDEN2)
    w3, b3 = linear(k3, HIDDEN2, out_size)
    return {"w1": w1, "b1": b1, "w2": w2, "b2": b2, "w3": w3, "b3": b3}


def _reference_bf16_matched(x, p, has_softmax=False):
    """Pure-JAX reference using the same bf16-input / f32-accumulate scheme."""
    bf = jnp.bfloat16
    h1 = jnp.maximum(
        jnp.dot(x.astype(bf), p["w1"].astype(bf),
                preferred_element_type=jnp.float32) + p["b1"], 0.0)
    h2 = jnp.maximum(
        jnp.dot(h1.astype(bf), p["w2"].astype(bf),
                preferred_element_type=jnp.float32) + p["b2"], 0.0)
    y = jnp.dot(h2.astype(bf), p["w3"].astype(bf),
                preferred_element_type=jnp.float32) + p["b3"]
    if has_softmax:
        y = jax.nn.softmax(y, axis=-1)
    return y


if __name__ == "__main__":
    key = jax.random.PRNGKey(0)
    kx, kp = jax.random.split(key)

    B = 8
    x = jax.random.normal(kx, (B, NUM_IN_FEATURES), jnp.float32)
    params = init_params(kp, out_size=3)

    # Default path (matches the PyTorch module default: no softmax).
    y = jax.block_until_ready(mlp_forward(x, params, has_softmax=False))
    y_ref = _reference_bf16_matched(x, params, has_softmax=False)
    assert y.shape == (B, 3)
    assert jnp.allclose(y, y_ref, atol=1e-3, rtol=1e-3), "mismatch vs matched JAX reference"

    # Optional softmax head (has_softmax=True).
    y_sm = jax.block_until_ready(mlp_forward(x, params, has_softmax=True))
    y_sm_ref = _reference_bf16_matched(x, params, has_softmax=True)
    assert y_sm.shape == (B, 3)
    assert jnp.allclose(jnp.sum(y_sm, axis=-1), 1.0, atol=5e-2), "softmax rows do not sum to 1"
    assert jnp.allclose(y_sm, y_sm_ref, atol=5e-2), "softmax mismatch vs matched reference"

    print("KERNEL_OK")
</pallas_src>

<mosaic_0001>
module attributes {stable_mosaic.version = 11 : i64} {
  func.func @_mlp_kernel(%arg0: i32, %arg1: memref<16x87xbf16, #tpu.memory_space<vmem>>, %arg2: memref<87x60xbf16, #tpu.memory_space<vmem>>, %arg3: memref<1x60xf32, #tpu.memory_space<vmem>>, %arg4: memref<60x20xbf16, #tpu.memory_space<vmem>>, %arg5: memref<1x20xf32, #tpu.memory_space<vmem>>, %arg6: memref<3x20xbf16, #tpu.memory_space<vmem>>, %arg7: memref<3x1xf32, #tpu.memory_space<vmem>>, %arg8: memref<3x16xf32, #tpu.memory_space<vmem>>) attributes {dimension_semantics = [#tpu.dimension_semantics<parallel>], iteration_bounds = array<i64: 1>, scalar_prefetch = 0 : i64, scratch_operands = 0 : i64, tpu.core_type = #tpu.core_type<tc>, window_params = [{transform_indices = @transform_0, window_bounds = array<i64: 16, 87>}, {pipeline_mode = #tpu.pipeline_mode<synchronous>, transform_indices = @transform_1, window_bounds = array<i64: 87, 60>}, {pipeline_mode = #tpu.pipeline_mode<synchronous>, transform_indices = @transform_2, window_bounds = array<i64: 1, 60>}, {pipeline_mode = #tpu.pipeline_mode<synchronous>, transform_indices = @transform_3, window_bounds = array<i64: 60, 20>}, {pipeline_mode = #tpu.pipeline_mode<synchronous>, transform_indices = @transform_4, window_bounds = array<i64: 1, 20>}, {pipeline_mode = #tpu.pipeline_mode<synchronous>, transform_indices = @transform_5, window_bounds = array<i64: 3, 20>}, {pipeline_mode = #tpu.pipeline_mode<synchronous>, transform_indices = @transform_6, window_bounds = array<i64: 3, 1>}, {transform_indices = @transform_7, window_bounds = array<i64: 3, 16>}]} {
    %c0 = arith.constant 0 : index
    %c0_0 = arith.constant 0 : index
    %0 = vector.load %arg1[%c0, %c0_0] : memref<16x87xbf16, #tpu.memory_space<vmem>>, vector<16x87xbf16>
    %c0_1 = arith.constant 0 : index
    %c0_2 = arith.constant 0 : index
    %1 = vector.load %arg2[%c0_1, %c0_2] : memref<87x60xbf16, #tpu.memory_space<vmem>>, vector<87x60xbf16>
    %c0_3 = arith.constant 0 : index
    %c0_4 = arith.constant 0 : index
    %2 = vector.load %arg4[%c0_3, %c0_4] : memref<60x20xbf16, #tpu.memory_space<vmem>>, vector<60x20xbf16>
    %c0_5 = arith.constant 0 : index
    %c0_6 = arith.constant 0 : index
    %3 = vector.load %arg6[%c0_5, %c0_6] : memref<3x20xbf16, #tpu.memory_space<vmem>>, vector<3x20xbf16>
    %c0_7 = arith.constant 0 : index
    %c0_8 = arith.constant 0 : index
    %4 = vector.load %arg3[%c0_7, %c0_8] : memref<1x60xf32, #tpu.memory_space<vmem>>, vector<1x60xf32>
    %c0_9 = arith.constant 0 : index
    %c0_10 = arith.constant 0 : index
    %5 = vector.load %arg5[%c0_9, %c0_10] : memref<1x20xf32, #tpu.memory_space<vmem>>, vector<1x20xf32>
    %c0_11 = arith.constant 0 : index
    %c0_12 = arith.constant 0 : index
    %6 = vector.load %arg7[%c0_11, %c0_12] : memref<3x1xf32, #tpu.memory_space<vmem>>, vector<3x1xf32>
    %cst = arith.constant dense<0.000000e+00> : vector<16x60xf32>
    %7 = tpu.matmul %0, %1, %cst {dimension_numbers = #tpu.dot_dimension_numbers<[1], [0], [0], [1], [0, 0, 1, 1], [], []>} : vector<16x87xbf16>, vector<87x60xbf16>, vector<16x60xf32> -> vector<16x60xf32>
    %8 = vector.broadcast %4 : vector<1x60xf32> to vector<16x60xf32>
    %9 = arith.addf %7, %8 : vector<16x60xf32>
    %cst_13 = arith.constant 0.000000e+00 : f32
    %10 = vector.broadcast %cst_13 : f32 to vector<16x60xf32>
    %11 = arith.maximumf %9, %10 : vector<16x60xf32>
    %12 = arith.truncf %11 : vector<16x60xf32> to vector<16x60xbf16>
    %cst_14 = arith.constant dense<0.000000e+00> : vector<16x20xf32>
    %13 = tpu.matmul %12, %2, %cst_14 {dimension_numbers = #tpu.dot_dimension_numbers<[1], [0], [0], [1], [0, 0, 1, 1], [], []>} : vector<16x60xbf16>, vector<60x20xbf16>, vector<16x20xf32> -> vector<16x20xf32>
    %14 = vector.broadcast %5 : vector<1x20xf32> to vector<16x20xf32>
    %15 = arith.addf %13, %14 : vector<16x20xf32>
    %cst_15 = arith.constant 0.000000e+00 : f32
    %16 = vector.broadcast %cst_15 : f32 to vector<16x20xf32>
    %17 = arith.maximumf %15, %16 : vector<16x20xf32>
    %18 = arith.truncf %17 : vector<16x20xf32> to vector<16x20xbf16>
    %cst_16 = arith.constant dense<0.000000e+00> : vector<3x16xf32>
    %19 = tpu.matmul %3, %18, %cst_16 {dimension_numbers = #tpu.dot_dimension_numbers<[1], [1], [0], [0], [0, 0, 1, 0], [], []>} : vector<3x20xbf16>, vector<16x20xbf16>, vector<3x16xf32> -> vector<3x16xf32>
    %20 = vector.broadcast %6 : vector<3x1xf32> to vector<3x16xf32>
    %21 = arith.addf %19, %20 : vector<3x16xf32>
    %c0_17 = arith.constant 0 : index
    %c0_18 = arith.constant 0 : index
    %22 = vector.load %arg8[%c0_17, %c0_18] : memref<3x16xf32, #tpu.memory_space<vmem>>, vector<3x16xf32>
    tpu.vector_store %arg8[%c0_17, %c0_18], %21 {strides = array<i32>} : memref<3x16xf32, #tpu.memory_space<vmem>>, vector<3x16xf32>,
    return
  }
  func.func @transform_0(%arg0: i32) -> (i32, i32) {
    %c0_i32 = arith.constant 0 : i32
    %c0_i32_0 = arith.constant 0 : i32
    return %arg0, %c0_i32 : i32, i32
  }
  func.func @transform_1(%arg0: i32) -> (i32, i32) {
    %c0_i32 = arith.constant 0 : i32
    %c0_i32_0 = arith.constant 0 : i32
    %c0_i32_1 = arith.constant 0 : i32
    return %c0_i32, %c0_i32_0 : i32, i32
  }
  func.func @transform_2(%arg0: i32) -> (i32, i32) {
    %c0_i32 = arith.constant 0 : i32
    %c0_i32_0 = arith.constant 0 : i32
    %c0_i32_1 = arith.constant 0 : i32
    return %c0_i32, %c0_i32_0 : i32, i32
  }
  func.func @transform_3(%arg0: i32) -> (i32, i32) {
    %c0_i32 = arith.constant 0 : i32
    %c0_i32_0 = arith.constant 0 : i32
    %c0_i32_1 = arith.constant 0 : i32
    return %c0_i32, %c0_i32_0 : i32, i32
  }
  func.func @transform_4(%arg0: i32) -> (i32, i32) {
    %c0_i32 = arith.constant 0 : i32
    %c0_i32_0 = arith.constant 0 : i32
    %c0_i32_1 = arith.constant 0 : i32
    return %c0_i32, %c0_i32_0 : i32, i32
  }
  func.func @transform_5(%arg0: i32) -> (i32, i32) {
    %c0_i32 = arith.constant 0 : i32
    %c0_i32_0 = arith.constant 0 : i32
    %c0_i32_1 = arith.constant 0 : i32
    return %c0_i32, %c0_i32_0 : i32, i32
  }
  func.func @transform_6(%arg0: i32) -> (i32, i32) {
    %c0_i32 = arith.constant 0 : i32
    %c0_i32_0 = arith.constant 0 : i32
    %c0_i32_1 = arith.constant 0 : i32
    return %c0_i32, %c0_i32_0 : i32, i32
  }
  func.func @transform_7(%arg0: i32) -> (i32, i32) {
    %c0_i32 = arith.constant 0 : i32
    %c0_i32_0 = arith.constant 0 : i32
    return %c0_i32, %arg0 : i32, i32
  }
}

</mosaic_0001>

<llo_original>
// kernel: tpu_custom_call.1
$region0: #{tpu_custom_call.1}
  #allocation0 [shape = 'u32[]', space=smem, size = 0x4, offset = 0x4, fixed_abs, tag = 'smem constant byte address 0x4 - core index']
  #allocation1 [shape = 'u32[144,128]{1,0:T(1,128)}', space=vmem, size = 0x12000, scoped, tag = 'internal scratch']
  %s0 = inlined_call_operand.vmem [shape: bf16[16,87], index: 0, kind: input, shape index: {}]
  %s1 = inlined_call_operand.vmem [shape: bf16[87,60], index: 1, kind: input, shape index: {}]
  %s2 = inlined_call_operand.vmem [shape: f32[1,60], index: 2, kind: input, shape index: {}]
  %s3 = inlined_call_operand.vmem [shape: bf16[60,20], index: 3, kind: input, shape index: {}]
  %s4 = inlined_call_operand.vmem [shape: f32[1,20], index: 4, kind: input, shape index: {}]
  %s5 = inlined_call_operand.vmem [shape: bf16[3,20], index: 5, kind: input, shape index: {}]
  %s6 = inlined_call_operand.vmem [shape: f32[3,1], index: 6, kind: input, shape index: {}]
  %s7 = inlined_call_operand.hbm [shape: f32[3,16], index: 7, kind: output, shape index: {}]
  %s8 = sld [smem:[#allocation0]]
  $region38: #{tpu_custom_call.1} parent=0
    _
  %s10 = ssub.s32 1, %s8
  %s11 = scalar_select 0, %s10, %s8
  $region1: #{tpu_custom_call.1} parent=0
    #allocation2 [shape = 'u8[2048]{0}', space=vmem, size = 0x800, scoped, tag = 'output window, operand 0, single buffered']
    #allocation3 [shape = 's32[1]{0}', space=sflag, size = 0x4, scoped, tag = 'scoped memory for tpu_custom_call.1']
    %12 = vsyncpa [#allocation3], 0
    // Predicated region
    $region2: #{tpu_custom_call.1} parent=1 // pred_check
      _
    $region3: #{tpu_custom_call.1} parent=1 // pred_check_branch
      %14 = sbr.rel (0) target = $region5
    $region4: #{tpu_custom_call.1} parent=1 // pred_region
      _
    $region5: #{tpu_custom_call.1} parent=1 // pred_fallthru
      _
    // Predicated region
    $region6: #{tpu_custom_call.1} parent=1 // pred_check
      _
    $region7: #{tpu_custom_call.1} parent=1 // pred_check_branch
      %16 = sbr.rel (0) target = $region9
    $region8: #{tpu_custom_call.1} parent=1 // pred_region
      _
    $region9: #{tpu_custom_call.1} parent=1 // pred_fallthru
      _
    // Predicated region
    $region10: #{tpu_custom_call.1} parent=1 // pred_check
      _
    $region11: #{tpu_custom_call.1} parent=1 // pred_check_branch
      %18 = sbr.rel (0) target = $region13
    $region12: #{tpu_custom_call.1} parent=1 // pred_region
      _
    $region13: #{tpu_custom_call.1} parent=1 // pred_fallthru
      _
    // Predicated region
    $region14: #{tpu_custom_call.1} parent=1 // pred_check
      _
    $region15: #{tpu_custom_call.1} parent=1 // pred_check_branch
      %20 = sbr.rel (0) target = $region17
    $region16: #{tpu_custom_call.1} parent=1 // pred_region
      _
    $region17: #{tpu_custom_call.1} parent=1 // pred_fallthru
      _
    // Predicated region
    $region18: #{tpu_custom_call.1} parent=1 // pred_check
      _
    $region19: #{tpu_custom_call.1} parent=1 // pred_check_branch
      %22 = sbr.rel (0) target = $region21
    $region20: #{tpu_custom_call.1} parent=1 // pred_region
      _
    $region21: #{tpu_custom_call.1} parent=1 // pred_fallthru
      _
    // Predicated region
    $region22: #{tpu_custom_call.1} parent=1 // pred_check
      _
    $region23: #{tpu_custom_call.1} parent=1 // pred_check_branch
      %24 = sbr.rel (0) target = $region25
    $region24: #{tpu_custom_call.1} parent=1 // pred_region
      _
    $region25: #{tpu_custom_call.1} parent=1 // pred_fallthru
      _
    // Predicated region
    $region26: #{tpu_custom_call.1} parent=1 // pred_check
      _
    $region27: #{tpu_custom_call.1} parent=1 // pred_check_branch
      %26 = sbr.rel (0) target = $region29
    $region28: #{tpu_custom_call.1} parent=1 // pred_region
      _
    $region29: #{tpu_custom_call.1} parent=1 // pred_fallthru
      _
    %v28 = vld [vmem:[%s0] sm:$0xf]
    %v29 = vld [vmem:[%s0 + $0x4] sm:$0xf]
    %v30 = vld [vmem:[%s1] sm:$0xf]
    %v31 = vld [vmem:[%s1 + $0x4] sm:$0xf]
    %v32 = vld [vmem:[%s1 + $0x8] sm:$0xf]
    %v33 = vld [vmem:[%s1 + $0xc] sm:$0xf]
    %v34 = vld [vmem:[%s1 + $0x10] sm:$0xf]
    %v35 = vld [vmem:[%s1 + $0x14] sm:$0xf]
    %v36 = vld [vmem:[%s1 + $0x18] sm:$0xf]
    %v37 = vld [vmem:[%s1 + $0x1c] sm:$0xf]
    %v38 = vld [vmem:[%s1 + $0x20] sm:$0xf]
    %v39 = vld [vmem:[%s1 + $0x24] sm:$0xf]
    %v40 = vld [vmem:[%s1 + $0x28] sm:$0xf]
    %v41 = vld [vmem:[%s3] sm:$0xf]
    %v42 = vld [vmem:[%s3 + $0x4] sm:$0xf]
    %v43 = vld [vmem:[%s3 + $0x8] sm:$0xf]
    %v44 = vld [vmem:[%s3 + $0xc] sm:$0xf]
    %v45 = vld [vmem:[%s3 + $0x10] sm:$0xf]
    %v46 = vld [vmem:[%s3 + $0x14] sm:$0xf]
    %v47 = vld [vmem:[%s3 + $0x18] sm:$0xf]
    %v48 = vld [vmem:[%s3 + $0x1c] sm:$0x3]
    %v49 = vld [vmem:[%s5] sm:$0x3]
    %v50 = vld [vmem:[%s2] sm:$0x1]
    %v51 = vld [vmem:[%s4] sm:$0x1]
    %v52 = vld [vmem:[%s6] sm:$0x7]
    %v54 = vlaneseq
    %v55 = vshrl.u32 %v54, 7
    %v56 = vsub.s32 0, %v55
    %v57 = vrot.slane %v50, %v56
    %v61 = vunpack.c.l.b16 %v28
    %v62 = vunpack.c.l.b16 %v29
    %v63 = vpack.c.b16 %v62, %v61
    %v75 = vunpack.c.l.b16 %v30
    %v76 = vunpack.c.l.b16 %v31
    %v77 = vunpack.c.l.b16 %v32
    %v78 = vunpack.c.l.b16 %v33
    %v79 = vunpack.c.l.b16 %v34
    %v80 = vunpack.c.l.b16 %v35
    %v81 = vunpack.c.l.b16 %v36
    %v82 = vunpack.c.l.b16 %v37
    %v83 = vunpack.c.l.b16 %v38
    %v84 = vunpack.c.l.b16 %v39
    %v85 = vunpack.c.l.b16 %v40
    %v86 = vpack.c.b16 %v76, %v75
    %v87 = vpack.c.b16 %v78, %v77
    %v88 = vpack.c.b16 %v80, %v79
    %v89 = vpack.c.b16 %v82, %v81
    %v90 = vpack.c.b16 %v84, %v83
    %v91 = vpack.c.b16 %v85, %v85
    %vm97 = vcmask 711680
    %v99 = vsel %vm97, %v63, 0
    %vm101 = vcmask 1042432
    %vm102 = vcmask 1043456
    %v103 = vsel %vm101, 4294967295, 65535
    %v104 = vsel %vm102, %v103, 0
    %v106 = vand.u32 %v91, %v104
    %108 = vmatprep.subr.bf16.mxu0 0
    %109 = vmatpush1.bf16.msra.mxu0 0
    %110 = vmatprep.subr.bf16.mxu0 0
    %111 = vmatpush1.bf16.msra.mxu0 0
    %112 = vmatprep.subr.bf16.mxu0 0
    %113 = vmatpush1.bf16.msra.mxu0 %v106
    %114 = vmatprep.subr.bf16.mxu0 0
    %115 = vmatpush1.bf16.msra.mxu0 %v90
    %116 = vmatprep.subr.bf16.mxu0 0
    %117 = vmatpush1.bf16.msra.mxu0 %v89
    %118 = vmatprep.subr.bf16.mxu0 0
    %119 = vmatpush1.bf16.msra.mxu0 %v88
    %120 = vmatprep.subr.bf16.mxu0 0
    %121 = vmatpush1.bf16.msra.mxu0 %v87
    %122 = vmatprep.subr.bf16.mxu0 0
    %123 = vmatpush1.bf16.msra.mxu0 %v86
    %124 = vmatprep.subr.bf16.mxu0 0
    %125 = vmatpush2.bf16.msra.mxu0 0
    %126 = vmatprep.subr.bf16.mxu0 0
    %127 = vmatpush2.bf16.msra.mxu0 0
    %128 = vmatprep.subr.bf16.mxu0 0
    %129 = vmatpush2.bf16.msra.mxu0 0
    %130 = vmatprep.subr.bf16.mxu0 0
    %131 = vmatpush2.bf16.msra.mxu0 0
    %132 = vmatprep.subr.bf16.mxu0 0
    %133 = vmatpush2.bf16.msra.mxu0 0
    %134 = vmatprep.subr.bf16.mxu0 0
    %135 = vmatpush2.bf16.msra.mxu0 0
    %136 = vmatprep.subr.bf16.mxu0 0
    %137 = vmatpush2.bf16.msra.mxu0 0
    %138 = vmatprep.subr.bf16.mxu0 0
    %139 = vmatpush2.bf16.msra.mxu0 0
    %140 = vmatprep.mubr.bf16.mxu0 0
    %141 = vmatmul.mubr.bf16.gmra.mxu0 %v99
    %v142 = vpop.f32.mrf.mxu0
    %v143 = vadd.f32 %v57, %v142
    %v144 = vpop.f32.mrf.mxu0
    %v145 = vpop.f32.mrf.mxu0
    %v146 = vadd.f32 %v57, %v145
    %v147 = vpop.f32.mrf.mxu0
    %148 = vdwg.mxu0
    %v149 = vmax.f32 %v143, 0.0
    %v150 = vmax.f32 %v146, 0.0
    %v151 = vpack.c.bf16 %v150, %v149
    %v153 = vlaneseq
    %v154 = vshrl.u32 %v153, 7
    %v155 = vsub.s32 0, %v154
    %v156 = vrot.slane %v51, %v155
    %v166 = vunpack.c.l.b16 %v41
    %v167 = vunpack.c.l.b16 %v42
    %v168 = vunpack.c.l.b16 %v43
    %v169 = vunpack.c.l.b16 %v44
    %v170 = vunpack.c.l.b16 %v45
    %v171 = vunpack.c.l.b16 %v46
    %v172 = vunpack.c.l.b16 %v47
    %v173 = vunpack.c.l.b16 %v48
    %v174 = vpack.c.b16 %v167, %v166
    %v175 = vpack.c.b16 %v169, %v168
    %v176 = vpack.c.b16 %v171, %v170
    %v177 = vpack.c.b16 %v173, %v172
    %vm181 = vcmask 490496
    %v183 = vsel %vm181, %v151, 0
    %vm185 = vcmask 1045504
    %v187 = vsel %vm185, %v177, 0
    %189 = vmatprep.subr.bf16.mxu0 0
    %190 = vmatpush1.bf16.msra.mxu0 0
    %191 = vmatprep.subr.bf16.mxu0 0
    %192 = vmatpush1.bf16.msra.mxu0 0
    %193 = vmatprep.subr.bf16.mxu0 0
    %194 = vmatpush1.bf16.msra.mxu0 0
    %195 = vmatprep.subr.bf16.mxu0 0
    %196 = vmatpush1.bf16.msra.mxu0 0
    %197 = vmatprep.subr.bf16.mxu0 0
    %198 = vmatpush1.bf16.msra.mxu0 %v187
    %199 = vmatprep.subr.bf16.mxu0 0
    %200 = vmatpush1.bf16.msra.mxu0 %v176
    %201 = vmatprep.subr.bf16.mxu0 0
    %202 = vmatpush1.bf16.msra.mxu0 %v175
    %203 = vmatprep.subr.bf16.mxu0 0
    %204 = vmatpush1.bf16.msra.mxu0 %v174
    %205 = vmatprep.subr.bf16.mxu0 0
    %206 = vmatpush2.bf16.msra.mxu0 0
    %207 = vmatprep.subr.bf16.mxu0 0
    %208 = vmatpush2.bf16.msra.mxu0 0
    %209 = vmatprep.subr.bf16.mxu0 0
    %210 = vmatpush2.bf16.msra.mxu0 0
    %211 = vmatprep.subr.bf16.mxu0 0
    %212 = vmatpush2.bf16.msra.mxu0 0
    %213 = vmatprep.subr.bf16.mxu0 0
    %214 = vmatpush2.bf16.msra.mxu0 0
    %215 = vmatprep.subr.bf16.mxu0 0
    %216 = vmatpush2.bf16.msra.mxu0 0
    %217 = vmatprep.subr.bf16.mxu0 0
    %218 = vmatpush2.bf16.msra.mxu0 0
    %219 = vmatprep.subr.bf16.mxu0 0
    %220 = vmatpush2.bf16.msra.mxu0 0
    %221 = vmatprep.mubr.bf16.mxu0 0
    %222 = vmatmul.mubr.bf16.gmra.mxu0 %v183
    %v223 = vpop.f32.mrf.mxu0
    %v224 = vadd.f32 %v156, %v223
    %v225 = vpop.f32.mrf.mxu0
    %v226 = vpop.f32.mrf.mxu0
    %v227 = vadd.f32 %v156, %v226
    %v228 = vpop.f32.mrf.mxu0
    %229 = vdwg.mxu0
    %v230 = vmax.f32 %v224, 0.0
    %v231 = vmax.f32 %v227, 0.0
    %v232 = vpack.c.bf16 %v231, %v230
    %234 = vset.pattern.permute.xlu0 0
    %235 = vperm.xlu0 %234, %v52
    %v236 = vpop.permute.xlu0 %235
    %vm238 = vcmask 162816
    %v240 = vsel %vm238, %v49, 0
    %v243 = vsel %vm238, %v232, 0
    %245 = vmatprep.subr.bf16.mxu0 0
    %246 = vmatpush1.bf16.xpose.msra.mxu0 0
    %247 = vmatprep.subr.bf16.mxu0 0
    %248 = vmatpush1.bf16.xpose.msra.mxu0 0
    %249 = vmatprep.subr.bf16.mxu0 0
    %250 = vmatpush1.bf16.xpose.msra.mxu0 0
    %251 = vmatprep.subr.bf16.mxu0 0
    %252 = vmatpush1.bf16.xpose.msra.mxu0 0
    %253 = vmatprep.subr.bf16.mxu0 0
    %254 = vmatpush1.bf16.xpose.msra.mxu0 0
    %255 = vmatprep.subr.bf16.mxu0 0
    %256 = vmatpush1.bf16.xpose.msra.mxu0 0
    %257 = vmatprep.subr.bf16.mxu0 0
    %258 = vmatpush1.bf16.xpose.msra.mxu0 0
    %259 = vmatprep.subr.bf16.mxu0 0
    %260 = vmatpush1.bf16.xpose.msra.mxu0 %v243
    %261 = vmatprep.subr.bf16.mxu0 0
    %262 = vmatpush2.bf16.xpose.msra.mxu0 0
    %263 = vmatprep.subr.bf16.mxu0 0
    %264 = vmatpush2.bf16.xpose.msra.mxu0 0
    %265 = vmatprep.subr.bf16.mxu0 0
    %266 = vmatpush2.bf16.xpose.msra.mxu0 0
    %267 = vmatprep.subr.bf16.mxu0 0
    %268 = vmatpush2.bf16.xpose.msra.mxu0 0
    %269 = vmatprep.subr.bf16.mxu0 0
    %270 = vmatpush2.bf16.xpose.msra.mxu0 0
    %271 = vmatprep.subr.bf16.mxu0 0
    %272 = vmatpush2.bf16.xpose.msra.mxu0 0
    %273 = vmatprep.subr.bf16.mxu0 0
    %274 = vmatpush2.bf16.xpose.msra.mxu0 0
    %275 = vmatprep.subr.bf16.mxu0 0
    %276 = vmatpush2.bf16.xpose.msra.mxu0 0
    %277 = vmatprep.mubr.bf16.mxu0 0
    %278 = vmatmul.mubr.bf16.gmra.mxu0 %v240
    %v279 = vpop.f32.mrf.mxu0
    %v280 = vadd.f32 %v236, %v279
    %v281 = vpop.f32.mrf.mxu0
    %v282 = vpop.f32.mrf.mxu0
    %v283 = vpop.f32.mrf.mxu0
    %284 = vdwg.mxu0
    %vm285 = vcmask 124928
    %286 = vst.msk [vmem:[#allocation2] sm:$0x7] %vm285, %v280
    // Predicated region
    $region30: #{tpu_custom_call.1} parent=1 // pred_check
      _
    $region31: #{tpu_custom_call.1} parent=1 // pred_check_branch
      %288 = sbr.rel (0) target = $region33
    $region32: #{tpu_custom_call.1} parent=1 // pred_region
      %s290 = ssub.s32 64, 64
      %291 = vsyncadd [#allocation3], %s290
      %s293 = sshll.u32 [#allocation2], 4
      %s294 = int_to_ptr.vmem [resolvable:$true] %s293
      %296 = dma.vmem_to_hbm [thread:$0]  %s294, 64, %s7, [#allocation3]
    $region33: #{tpu_custom_call.1} parent=1 // pred_fallthru
      _
    // Predicated region
    $region34: #{tpu_custom_call.1} parent=1 // pred_check
      _
    $region35: #{tpu_custom_call.1} parent=1 // pred_check_branch
      %298 = sbr.rel (0) target = $region37
    $region36: #{tpu_custom_call.1} parent=1 // pred_region
      %299 = dma.done [#allocation3], 64
    $region37: #{tpu_custom_call.1} parent=1 // pred_fallthru
      _
    %300 = vsyncpa [#allocation3], 1

</llo_original>
